<compile_context>
chip_gen: v5e
topology: v5e:2x2
jax: 0.10.0
libtpu: 0.0.40
codegen_flags: <defaults>
</compile_context>

<pallas_src>
import functools

import jax
import jax.numpy as jnp
from jax.experimental import pallas as pl
from jax.experimental.pallas import tpu as pltpu


def gen_mlp_kernel(x_ref,
                   w1_ref, b1_ref,
                   w2_ref, b2_ref,
                   w3_ref, b3_ref,
                   w4_ref, b4_ref,
                   o_ref,
                   *, compute_dtype):
    """One batch-tile of the Gen forward pass (all 4 Linear layers fused)."""
    neg_slope = jnp.float32(0.01)  # PyTorch default LeakyReLU slope

    def linear_lrelu(h, w_ref, b_ref):
        # MXU matmul with f32 accumulation; bias add + LeakyReLU in f32.
        a = jnp.dot(h, w_ref[...], preferred_element_type=jnp.float32)
        a = a + b_ref[...]
        return jnp.maximum(a, neg_slope * a)   # single vmax per element

    h = x_ref[...]                                      # bf16 (cast in wrapper)
    a = linear_lrelu(h, w1_ref, b1_ref)                 # (tile_m, H1) f32
    a = linear_lrelu(a.astype(compute_dtype), w2_ref, b2_ref)   # (tile_m, H2)
    a = linear_lrelu(a.astype(compute_dtype), w3_ref, b3_ref)   # (tile_m, H3)

    # Final H3 -> 1 projection: a 1-column MXU matmul would use <1% of the MXU,
    # so do it as a VPU multiply + lane reduction in f32.  w4_ref is (1, H3).
    out = jnp.sum(a * w4_ref[...], axis=-1, keepdims=True) + b4_ref[...]
    o_ref[...] = jnp.tanh(out)


def gen_forward(x, params, *, tile_m=256, compute_dtype=jnp.bfloat16):
    """Equivalent of Gen.forward: returns (batch, 1) tanh output."""
    (w1, b1), (w2, b2), (w3, b3), (w4, b4) = params
    B, F = x.shape
    H1, H2, H3 = w1.shape[1], w2.shape[1], w3.shape[1]

    # Pad the batch so any batch size works with a big MXU-friendly tile.
    num_tiles = pl.cdiv(B, tile_m)
    B_pad = num_tiles * tile_m
    if B_pad != B:
        x = jnp.pad(x, ((0, B_pad - B), (0, 0)))

    # bf16 inputs for the three large matmuls (f32 accumulation in-kernel).
    xc = x.astype(compute_dtype)
    w1c = w1.astype(compute_dtype)
    w2c = w2.astype(compute_dtype)
    w3c = w3.astype(compute_dtype)
    # Last layer stays f32 and is stored as a (1, H3) row for the VPU reduce.
    w4_row = w4.reshape(1, H3).astype(jnp.float32)

    def full_spec(shape):
        # Grid-invariant block: fetched once, kept resident in VMEM.
        return pl.BlockSpec(shape, lambda i: tuple(0 for _ in shape))

    kernel = functools.partial(gen_mlp_kernel, compute_dtype=compute_dtype)

    out = pl.pallas_call(
        kernel,
        out_shape=jax.ShapeDtypeStruct((B_pad, 1), jnp.float32),
        grid_spec=pltpu.PrefetchScalarGridSpec(
            num_scalar_prefetch=0,
            grid=(num_tiles,),
            in_specs=[
                pl.BlockSpec((tile_m, F), lambda i: (i, 0)),
                full_spec((F, H1)), full_spec((1, H1)),
                full_spec((H1, H2)), full_spec((1, H2)),
                full_spec((H2, H3)), full_spec((1, H3)),
                full_spec((1, H3)), full_spec((1, 1)),
            ],
            out_specs=pl.BlockSpec((tile_m, 1), lambda i: (i, 0)),
        ),
        compiler_params=pltpu.CompilerParams(
            dimension_semantics=("parallel",)),
    )(xc, w1c, b1, w2c, b2, w3c, b3, w4_row, b4)

    # .view(len(input), -1) in the PyTorch module -> (B, 1); drop batch padding.
    return out[:B]


def init_params(key, n_features, layers):
    """Deterministic init mimicking nn.Linear's uniform(-1/sqrt(fan_in), ...)."""
    sizes = [n_features] + list(layers) + [1]
    params = []
    for i in range(len(sizes) - 1):
        fan_in, fan_out = sizes[i], sizes[i + 1]
        key, kw, kb = jax.random.split(key, 3)
        bound = 1.0 / jnp.sqrt(jnp.float32(fan_in))
        w = jax.random.uniform(kw, (fan_in, fan_out), jnp.float32, -bound, bound)
        b = jax.random.uniform(kb, (1, fan_out), jnp.float32, -bound, bound)
        params.append((w, b))
    return params


def gen_reference(x, params):
    """Pure-JAX f32 reference of Gen.forward for a correctness check."""
    h = x
    n = len(params)
    for i, (w, b) in enumerate(params):
        h = h @ w + b
        if i != n - 1:
            h = jnp.where(h > 0, h, 0.01 * h)
    return jnp.tanh(h)


if __name__ == "__main__":
    key = jax.random.PRNGKey(0)
    kx, kp = jax.random.split(key)

    # Small, lane-aligned analogue of (n_features, [512, 256, 128]).
    batch = 512            # 2 grid steps at tile_m=256 -> both v7x TCs busy
    n_features = 128
    layers = [128, 128, 128]

    x = jax.random.normal(kx, (batch, n_features), dtype=jnp.float32)
    params = init_params(kp, n_features, layers)

    out = gen_forward(x, params, tile_m=256)
    out = jax.block_until_ready(out)

    ref = gen_reference(x, params)
    assert out.shape == (batch, 1), out.shape
    # bf16 matmul inputs -> loosened tolerance vs the f32 reference.
    assert jnp.allclose(out, ref, atol=3e-2, rtol=3e-2), "mismatch vs reference"

    print("KERNEL_OK")
</pallas_src>

<mosaic_0001>
module attributes {stable_mosaic.version = 11 : i64} {
  func.func @gen_mlp_kernel(%arg0: i32, %arg1: memref<256x128xbf16, #tpu.memory_space<vmem>>, %arg2: memref<128x128xbf16, #tpu.memory_space<vmem>>, %arg3: memref<1x128xf32, #tpu.memory_space<vmem>>, %arg4: memref<128x128xbf16, #tpu.memory_space<vmem>>, %arg5: memref<1x128xf32, #tpu.memory_space<vmem>>, %arg6: memref<128x128xbf16, #tpu.memory_space<vmem>>, %arg7: memref<1x128xf32, #tpu.memory_space<vmem>>, %arg8: memref<1x128xf32, #tpu.memory_space<vmem>>, %arg9: memref<1x1xf32, #tpu.memory_space<vmem>>, %arg10: memref<256x1xf32, #tpu.memory_space<vmem>>) attributes {dimension_semantics = [#tpu.dimension_semantics<parallel>], iteration_bounds = array<i64: 2>, scalar_prefetch = 0 : i64, scratch_operands = 0 : i64, tpu.core_type = #tpu.core_type<tc>, window_params = [{transform_indices = @transform_0, window_bounds = array<i64: 256, 128>}, {pipeline_mode = #tpu.pipeline_mode<synchronous>, transform_indices = @transform_1, window_bounds = array<i64: 128, 128>}, {pipeline_mode = #tpu.pipeline_mode<synchronous>, transform_indices = @transform_2, window_bounds = array<i64: 1, 128>}, {pipeline_mode = #tpu.pipeline_mode<synchronous>, transform_indices = @transform_3, window_bounds = array<i64: 128, 128>}, {pipeline_mode = #tpu.pipeline_mode<synchronous>, transform_indices = @transform_4, window_bounds = array<i64: 1, 128>}, {pipeline_mode = #tpu.pipeline_mode<synchronous>, transform_indices = @transform_5, window_bounds = array<i64: 128, 128>}, {pipeline_mode = #tpu.pipeline_mode<synchronous>, transform_indices = @transform_6, window_bounds = array<i64: 1, 128>}, {pipeline_mode = #tpu.pipeline_mode<synchronous>, transform_indices = @transform_7, window_bounds = array<i64: 1, 128>}, {pipeline_mode = #tpu.pipeline_mode<synchronous>, transform_indices = @transform_8, window_bounds = array<i64: 1, 1>}, {transform_indices = @transform_9, window_bounds = array<i64: 256, 1>}]} {
    %c0 = arith.constant 0 : index
    %c0_0 = arith.constant 0 : index
    %0 = vector.load %arg1[%c0, %c0_0] : memref<256x128xbf16, #tpu.memory_space<vmem>>, vector<256x128xbf16>
    %c0_1 = arith.constant 0 : index
    %c0_2 = arith.constant 0 : index
    %1 = vector.load %arg2[%c0_1, %c0_2] : memref<128x128xbf16, #tpu.memory_space<vmem>>, vector<128x128xbf16>
    %cst = arith.constant dense<0.000000e+00> : vector<256x128xf32>
    %2 = tpu.matmul %0, %1, %cst {dimension_numbers = #tpu.dot_dimension_numbers<[1], [0], [0], [1], [0, 0, 1, 1], [], []>} : vector<256x128xbf16>, vector<128x128xbf16>, vector<256x128xf32> -> vector<256x128xf32>
    %c0_3 = arith.constant 0 : index
    %c0_4 = arith.constant 0 : index
    %3 = vector.load %arg3[%c0_3, %c0_4] : memref<1x128xf32, #tpu.memory_space<vmem>>, vector<1x128xf32>
    %4 = vector.broadcast %3 : vector<1x128xf32> to vector<256x128xf32>
    %5 = arith.addf %2, %4 : vector<256x128xf32>
    %cst_5 = arith.constant 0.00999999977 : f32
    %6 = vector.broadcast %cst_5 : f32 to vector<256x128xf32>
    %7 = arith.mulf %6, %5 : vector<256x128xf32>
    %8 = arith.maximumf %5, %7 : vector<256x128xf32>
    %9 = arith.truncf %8 : vector<256x128xf32> to vector<256x128xbf16>
    %c0_6 = arith.constant 0 : index
    %c0_7 = arith.constant 0 : index
    %10 = vector.load %arg4[%c0_6, %c0_7] : memref<128x128xbf16, #tpu.memory_space<vmem>>, vector<128x128xbf16>
    %cst_8 = arith.constant dense<0.000000e+00> : vector<256x128xf32>
    %11 = tpu.matmul %9, %10, %cst_8 {dimension_numbers = #tpu.dot_dimension_numbers<[1], [0], [0], [1], [0, 0, 1, 1], [], []>} : vector<256x128xbf16>, vector<128x128xbf16>, vector<256x128xf32> -> vector<256x128xf32>
    %c0_9 = arith.constant 0 : index
    %c0_10 = arith.constant 0 : index
    %12 = vector.load %arg5[%c0_9, %c0_10] : memref<1x128xf32, #tpu.memory_space<vmem>>, vector<1x128xf32>
    %13 = vector.broadcast %12 : vector<1x128xf32> to vector<256x128xf32>
    %14 = arith.addf %11, %13 : vector<256x128xf32>
    %cst_11 = arith.constant 0.00999999977 : f32
    %15 = vector.broadcast %cst_11 : f32 to vector<256x128xf32>
    %16 = arith.mulf %15, %14 : vector<256x128xf32>
    %17 = arith.maximumf %14, %16 : vector<256x128xf32>
    %18 = arith.truncf %17 : vector<256x128xf32> to vector<256x128xbf16>
    %c0_12 = arith.constant 0 : index
    %c0_13 = arith.constant 0 : index
    %19 = vector.load %arg6[%c0_12, %c0_13] : memref<128x128xbf16, #tpu.memory_space<vmem>>, vector<128x128xbf16>
    %cst_14 = arith.constant dense<0.000000e+00> : vector<256x128xf32>
    %20 = tpu.matmul %18, %19, %cst_14 {dimension_numbers = #tpu.dot_dimension_numbers<[1], [0], [0], [1], [0, 0, 1, 1], [], []>} : vector<256x128xbf16>, vector<128x128xbf16>, vector<256x128xf32> -> vector<256x128xf32>
    %c0_15 = arith.constant 0 : index
    %c0_16 = arith.constant 0 : index
    %21 = vector.load %arg7[%c0_15, %c0_16] : memref<1x128xf32, #tpu.memory_space<vmem>>, vector<1x128xf32>
    %22 = vector.broadcast %21 : vector<1x128xf32> to vector<256x128xf32>
    %23 = arith.addf %20, %22 : vector<256x128xf32>
    %cst_17 = arith.constant 0.00999999977 : f32
    %24 = vector.broadcast %cst_17 : f32 to vector<256x128xf32>
    %25 = arith.mulf %24, %23 : vector<256x128xf32>
    %26 = arith.maximumf %23, %25 : vector<256x128xf32>
    %c0_18 = arith.constant 0 : index
    %c0_19 = arith.constant 0 : index
    %27 = vector.load %arg8[%c0_18, %c0_19] : memref<1x128xf32, #tpu.memory_space<vmem>>, vector<1x128xf32>
    %28 = vector.broadcast %27 : vector<1x128xf32> to vector<256x128xf32>
    %29 = arith.mulf %26, %28 : vector<256x128xf32>
    %cst_20 = arith.constant dense<0.000000e+00> : vector<256xf32>
    %30 = vector.multi_reduction <add>, %29, %cst_20 [1] : vector<256x128xf32> to vector<256xf32>
    %31 = vector.shape_cast %30 : vector<256xf32> to vector<256x1xf32>
    %c0_21 = arith.constant 0 : index
    %c0_22 = arith.constant 0 : index
    %32 = vector.load %arg9[%c0_21, %c0_22] : memref<1x1xf32, #tpu.memory_space<vmem>>, vector<1x1xf32>
    %33 = vector.broadcast %32 : vector<1x1xf32> to vector<256x1xf32>
    %34 = arith.addf %31, %33 : vector<256x1xf32>
    %35 = math.tanh %34 : vector<256x1xf32>
    %c0_23 = arith.constant 0 : index
    %c0_24 = arith.constant 0 : index
    %36 = vector.load %arg10[%c0_23, %c0_24] : memref<256x1xf32, #tpu.memory_space<vmem>>, vector<256x1xf32>
    tpu.vector_store %arg10[%c0_23, %c0_24], %35 {strides = array<i32>} : memref<256x1xf32, #tpu.memory_space<vmem>>, vector<256x1xf32>,
    return
  }
  func.func @transform_0(%arg0: i32) -> (i32, i32) {
    %c0_i32 = arith.constant 0 : i32
    %c0_i32_0 = arith.constant 0 : i32
    return %arg0, %c0_i32 : i32, i32
  }
  func.func @transform_1(%arg0: i32) -> (i32, i32) {
    %c0_i32 = arith.constant 0 : i32
    %c0_i32_0 = arith.constant 0 : i32
    %c0_i32_1 = arith.constant 0 : i32
    return %c0_i32, %c0_i32_0 : i32, i32
  }
  func.func @transform_2(%arg0: i32) -> (i32, i32) {
    %c0_i32 = arith.constant 0 : i32
    %c0_i32_0 = arith.constant 0 : i32
    %c0_i32_1 = arith.constant 0 : i32
    return %c0_i32, %c0_i32_0 : i32, i32
  }
  func.func @transform_3(%arg0: i32) -> (i32, i32) {
    %c0_i32 = arith.constant 0 : i32
    %c0_i32_0 = arith.constant 0 : i32
    %c0_i32_1 = arith.constant 0 : i32
    return %c0_i32, %c0_i32_0 : i32, i32
  }
  func.func @transform_4(%arg0: i32) -> (i32, i32) {
    %c0_i32 = arith.constant 0 : i32
    %c0_i32_0 = arith.constant 0 : i32
    %c0_i32_1 = arith.constant 0 : i32
    return %c0_i32, %c0_i32_0 : i32, i32
  }
  func.func @transform_5(%arg0: i32) -> (i32, i32) {
    %c0_i32 = arith.constant 0 : i32
    %c0_i32_0 = arith.constant 0 : i32
    %c0_i32_1 = arith.constant 0 : i32
    return %c0_i32, %c0_i32_0 : i32, i32
  }
  func.func @transform_6(%arg0: i32) -> (i32, i32) {
    %c0_i32 = arith.constant 0 : i32
    %c0_i32_0 = arith.constant 0 : i32
    %c0_i32_1 = arith.constant 0 : i32
    return %c0_i32, %c0_i32_0 : i32, i32
  }
  func.func @transform_7(%arg0: i32) -> (i32, i32) {
    %c0_i32 = arith.constant 0 : i32
    %c0_i32_0 = arith.constant 0 : i32
    %c0_i32_1 = arith.constant 0 : i32
    return %c0_i32, %c0_i32_0 : i32, i32
  }
  func.func @transform_8(%arg0: i32) -> (i32, i32) {
    %c0_i32 = arith.constant 0 : i32
    %c0_i32_0 = arith.constant 0 : i32
    %c0_i32_1 = arith.constant 0 : i32
    return %c0_i32, %c0_i32_0 : i32, i32
  }
  func.func @transform_9(%arg0: i32) -> (i32, i32) {
    %c0_i32 = arith.constant 0 : i32
    %c0_i32_0 = arith.constant 0 : i32
    return %arg0, %c0_i32 : i32, i32
  }
}

</mosaic_0001>

<llo_original>
// kernel: tpu_custom_call.1
$region0: #{tpu_custom_call.1}
  #allocation0 [shape = 'u32[]', space=smem, size = 0x4, offset = 0x4, fixed_abs, tag = 'smem constant byte address 0x4 - core index']
  #allocation1 [shape = 'u32[72,128]{1,0:T(1,128)}', space=vmem, size = 0x9000, scoped, tag = 'internal scratch']
  #allocation2 [shape = 'f32[1,1]{1,0:T(1,128)S(1)}', space=vmem, size = 0x200, scoped, tag = 'scoped memory for tpu_custom_call.1']
  %s0 = inlined_call_operand.hbm [shape: bf16[512,128], index: 0, kind: input, shape index: {}]
  %s1 = inlined_call_operand.hbm [shape: bf16[128,128], index: 1, kind: input, shape index: {}]
  %s2 = inlined_call_operand.vmem [shape: f32[1,128], index: 2, kind: input, shape index: {}]
  %s3 = inlined_call_operand.hbm [shape: bf16[128,128], index: 3, kind: input, shape index: {}]
  %s4 = inlined_call_operand.vmem [shape: f32[1,128], index: 4, kind: input, shape index: {}]
  %s5 = inlined_call_operand.hbm [shape: bf16[128,128], index: 5, kind: input, shape index: {}]
  %s6 = inlined_call_operand.vmem [shape: f32[1,128], index: 6, kind: input, shape index: {}]
  %s7 = inlined_call_operand.vmem [shape: f32[1,128], index: 7, kind: input, shape index: {}]
  %s8 = inlined_call_operand.<no memory space> [shape: f32[1,1], index: 8, kind: input, shape index: {}]
  %s9 = inlined_call_operand.vmem [shape: f32[512,1], index: 9, kind: output, shape index: {}]
  %s10 = sld [smem:[#allocation0]]
  $region85: #{tpu_custom_call.1} parent=0
    _
  %s12 = ssub.s32 1, %s10
  %s13 = scalar_select 0, %s12, %s10
  %v14 = vstv %s8
  %15 = vst [vmem:[#allocation2] sm:$0x1] %v14
  $region1: #{tpu_custom_call.1} parent=0
    #allocation3 [shape = 'u8[131072]{0}', space=vmem, size = 0x20000, scoped, tag = 'input window, operand 0']
    #allocation4 [shape = 's32[2]{0}', space=sflag, size = 0x8, scoped, tag = 'scoped memory for tpu_custom_call.1']
    #allocation5 [shape = 'u8[32768]{0}', space=vmem, size = 0x8000, scoped, tag = 'input window, operand 1, single buffered']
    #allocation6 [shape = 's32[1]{0}', space=sflag, size = 0x4, scoped, tag = 'scoped memory for tpu_custom_call.1']
    #allocation7 [shape = 'u8[32768]{0}', space=vmem, size = 0x8000, scoped, tag = 'input window, operand 3, single buffered']
    #allocation8 [shape = 'u8[32768]{0}', space=vmem, size = 0x8000, scoped, tag = 'input window, operand 5, single buffered']
    #allocation9 [shape = 's32[1]{0}', space=sflag, size = 0x4, scoped, tag = 'scoped memory for tpu_custom_call.1']
    %16 = vsyncpa [#allocation4], 0
    %s17 = scalar_lea.sflag [#allocation4], 1
    %18 = vsyncpa %s17, 0
    %19 = vsyncpa [#allocation6], 0
    %20 = vsyncpa [#allocation9], 0
    loop: start=0, step=1, limit=4
    $region2: #{tpu_custom_call.1} parent=1 // loop_pre_header
      _
    $region3: #{tpu_custom_call.1} parent=1 // loop_header
      %s22 = sphi 0, %s26
      %p23 = scmp.ge.s32.totalorder %s22, 4
      %s32 = sphi 0, %s34
      %s35 = sphi 0, %s32
      %s36 = sphi 0, %s35
      %s52 = sphi 0, %s36
      %s56 = sphi 0, %s56
      %s58 = sphi 0, %s56
      %s59 = sphi 0, %s58
      %s73 = sphi 0, %s59
      %s77 = sphi 0, %s77
      %s79 = sphi 0, %s77
      %s80 = sphi 0, %s79
      %s94 = sphi 0, %s80
      %s98 = sphi 0, %s98
      %s100 = sphi 0, %s98
      %s101 = sphi 0, %s100
      %s115 = sphi 0, %s101
      %s119 = sphi 0, %s119
      %s121 = sphi 0, %s119
      %s122 = sphi 0, %s121
      %s136 = sphi 0, %s122
      %s140 = sphi 0, %s140
      %s142 = sphi 0, %s140
      %s143 = sphi 0, %s142
      %s157 = sphi 0, %s143
      %s161 = sphi 0, %s161
      %s163 = sphi 0, %s161
      %s164 = sphi 0, %s163
      %s178 = sphi 0, %s164
      %s182 = sphi 0, %s182
      %s184 = sphi 0, %s182
      %s185 = sphi 0, %s184
      %s199 = sphi 0, %s185
      %s203 = sphi 0, %s203
      %s205 = sphi 0, %s203
      %s206 = sphi 0, %s205
      %s220 = sphi 0, %s206
      %s226 = sphi 0, %s228
      %s229 = sphi 0, %s226
      %s230 = sphi 0, %s229
      %s246 = sphi 0, %s230
    $region4: #{tpu_custom_call.1} parent=1 // loop_header_branch
      %25 = sbr.rel (%p23) target = $region8
    $region5: #{tpu_custom_call.1} parent=1 // loop_body
      %s27 = ssub.s32 %s22, 1
      %s28 = ssub.s32 %s22, 2
      %s29 = sadd.s32 %s22, 1
      %s30 = ssub.s32 %s22, %s29
      %p31 = scmp.eq.s32.totalorder %s30, 0
      %s33 = sadd.s32 %s32, 1
      %s34 = scalar_select %p31, %s32, %s33
      %p37 = pneg %p31
      %p38 = scmp.eq.s32.totalorder %s22, 1
      %p39 = por %p37, %p38
      %p40 = scmp.ne.s32.totalorder %s32, %s35
      %p41 = scmp.eq.s32.totalorder %s22, 0
      %p42 = por %p40, %p41
      %p43 = scmp.ne.s32.totalorder %s32, %s35
      %p44 = scmp.eq.s32.totalorder %s27, 1
      %p45 = por %p43, %p44
      %p46 = scmp.ne.s32.totalorder %s35, %s36
      %p47 = scmp.eq.s32.totalorder %s27, 0
      %p48 = por %p46, %p47
      %p49 = scmp.ne.s32.totalorder %s35, %s36
      %p50 = scmp.eq.s32.totalorder %s28, 1
      %p51 = por %p49, %p50
      %p53 = scmp.ne.s32.totalorder %s36, %s52
      %p54 = scmp.eq.s32.totalorder %s28, 0
      %p55 = por %p53, %p54
      %s57 = sadd.s32 %s56, 1
      %p60 = scmp.eq.s32.totalorder %s22, 1
      %p61 = scmp.ne.s32.totalorder %s56, %s58
      %p62 = scmp.eq.s32.totalorder %s22, 0
      %p63 = por %p61, %p62
      %p64 = scmp.ne.s32.totalorder %s56, %s58
      %p65 = scmp.eq.s32.totalorder %s27, 1
      %p66 = por %p64, %p65
      %p67 = scmp.ne.s32.totalorder %s58, %s59
      %p68 = scmp.eq.s32.totalorder %s27, 0
      %p69 = por %p67, %p68
      %p70 = scmp.ne.s32.totalorder %s58, %s59
      %p71 = scmp.eq.s32.totalorder %s28, 1
      %p72 = por %p70, %p71
      %p74 = scmp.ne.s32.totalorder %s59, %s73
      %p75 = scmp.eq.s32.totalorder %s28, 0
      %p76 = por %p74, %p75
      %s78 = sadd.s32 %s77, 1
      %p81 = scmp.eq.s32.totalorder %s22, 1
      %p82 = scmp.ne.s32.totalorder %s77, %s79
      %p83 = scmp.eq.s32.totalorder %s22, 0
      %p84 = por %p82, %p83
      %p85 = scmp.ne.s32.totalorder %s77, %s79
      %p86 = scmp.eq.s32.totalorder %s27, 1
      %p87 = por %p85, %p86
      %p88 = scmp.ne.s32.totalorder %s79, %s80
      %p89 = scmp.eq.s32.totalorder %s27, 0
      %p90 = por %p88, %p89
      %p91 = scmp.ne.s32.totalorder %s79, %s80
      %p92 = scmp.eq.s32.totalorder %s28, 1
      %p93 = por %p91, %p92
      %p95 = scmp.ne.s32.totalorder %s80, %s94
      %p96 = scmp.eq.s32.totalorder %s28, 0
      %p97 = por %p95, %p96
      %s99 = sadd.s32 %s98, 1
      %p102 = scmp.eq.s32.totalorder %s22, 1
      %p103 = scmp.ne.s32.totalorder %s98, %s100
      %p104 = scmp.eq.s32.totalorder %s22, 0
      %p105 = por %p103, %p104
      %p106 = scmp.ne.s32.totalorder %s98, %s100
      %p107 = scmp.eq.s32.totalorder %s27, 1
      %p108 = por %p106, %p107
      %p109 = scmp.ne.s32.totalorder %s100, %s101
      %p110 = scmp.eq.s32.totalorder %s27, 0
      %p111 = por %p109, %p110
      %p112 = scmp.ne.s32.totalorder %s100, %s101
      %p113 = scmp.eq.s32.totalorder %s28, 1
      %p114 = por %p112, %p113
      %p116 = scmp.ne.s32.totalorder %s101, %s115
      %p117 = scmp.eq.s32.totalorder %s28, 0
      %p118 = por %p116, %p117
      %s120 = sadd.s32 %s119, 1
      %p123 = scmp.eq.s32.totalorder %s22, 1
      %p124 = scmp.ne.s32.totalorder %s119, %s121
      %p125 = scmp.eq.s32.totalorder %s22, 0
      %p126 = por %p124, %p125
      %p127 = scmp.ne.s32.totalorder %s119, %s121
      %p128 = scmp.eq.s32.totalorder %s27, 1
      %p129 = por %p127, %p128
      %p130 = scmp.ne.s32.totalorder %s121, %s122
      %p131 = scmp.eq.s32.totalorder %s27, 0
      %p132 = por %p130, %p131
      %p133 = scmp.ne.s32.totalorder %s121, %s122
      %p134 = scmp.eq.s32.totalorder %s28, 1
      %p135 = por %p133, %p134
      %p137 = scmp.ne.s32.totalorder %s122, %s136
      %p138 = scmp.eq.s32.totalorder %s28, 0
      %p139 = por %p137, %p138
      %s141 = sadd.s32 %s140, 1
      %p144 = scmp.eq.s32.totalorder %s22, 1
      %p145 = scmp.ne.s32.totalorder %s140, %s142
      %p146 = scmp.eq.s32.totalorder %s22, 0
      %p147 = por %p145, %p146
      %p148 = scmp.ne.s32.totalorder %s140, %s142
      %p149 = scmp.eq.s32.totalorder %s27, 1
      %p150 = por %p148, %p149
      %p151 = scmp.ne.s32.totalorder %s142, %s143
      %p152 = scmp.eq.s32.totalorder %s27, 0
      %p153 = por %p151, %p152
      %p154 = scmp.ne.s32.totalorder %s142, %s143
      %p155 = scmp.eq.s32.totalorder %s28, 1
      %p156 = por %p154, %p155
      %p158 = scmp.ne.s32.totalorder %s143, %s157
      %p159 = scmp.eq.s32.totalorder %s28, 0
      %p160 = por %p158, %p159
      %s162 = sadd.s32 %s161, 1
      %p165 = scmp.eq.s32.totalorder %s22, 1
      %p166 = scmp.ne.s32.totalorder %s161, %s163
      %p167 = scmp.eq.s32.totalorder %s22, 0
      %p168 = por %p166, %p167
      %p169 = scmp.ne.s32.totalorder %s161, %s163
      %p170 = scmp.eq.s32.totalorder %s27, 1
      %p171 = por %p169, %p170
      %p172 = scmp.ne.s32.totalorder %s163, %s164
      %p173 = scmp.eq.s32.totalorder %s27, 0
      %p174 = por %p172, %p173
      %p175 = scmp.ne.s32.totalorder %s163, %s164
      %p176 = scmp.eq.s32.totalorder %s28, 1
      %p177 = por %p175, %p176
      %p179 = scmp.ne.s32.totalorder %s164, %s178
      %p180 = scmp.eq.s32.totalorder %s28, 0
      %p181 = por %p179, %p180
      %s183 = sadd.s32 %s182, 1
      %p186 = scmp.eq.s32.totalorder %s22, 1
      %p187 = scmp.ne.s32.totalorder %s182, %s184
      %p188 = scmp.eq.s32.totalorder %s22, 0
      %p189 = por %p187, %p188
      %p190 = scmp.ne.s32.totalorder %s182, %s184
      %p191 = scmp.eq.s32.totalorder %s27, 1
      %p192 = por %p190, %p191
      %p193 = scmp.ne.s32.totalorder %s184, %s185
      %p194 = scmp.eq.s32.totalorder %s27, 0
      %p195 = por %p193, %p194
      %p196 = scmp.ne.s32.totalorder %s184, %s185
      %p197 = scmp.eq.s32.totalorder %s28, 1
      %p198 = por %p196, %p197
      %p200 = scmp.ne.s32.totalorder %s185, %s199
      %p201 = scmp.eq.s32.totalorder %s28, 0
      %p202 = por %p200, %p201
      %s204 = sadd.s32 %s203, 1
      %p207 = scmp.eq.s32.totalorder %s22, 1
      %p208 = scmp.ne.s32.totalorder %s203, %s205
      %p209 = scmp.eq.s32.totalorder %s22, 0
      %p210 = por %p208, %p209
      %p211 = scmp.ne.s32.totalorder %s203, %s205
      %p212 = scmp.eq.s32.totalorder %s27, 1
      %p213 = por %p211, %p212
      %p214 = scmp.ne.s32.totalorder %s205, %s206
      %p215 = scmp.eq.s32.totalorder %s27, 0
      %p216 = por %p214, %p215
      %p217 = scmp.ne.s32.totalorder %s205, %s206
      %p218 = scmp.eq.s32.totalorder %s28, 1
      %p219 = por %p217, %p218
      %p221 = scmp.ne.s32.totalorder %s206, %s220
      %p222 = scmp.eq.s32.totalorder %s28, 0
      %p223 = por %p221, %p222
      %s224 = ssub.s32 %s22, %s29
      %p225 = scmp.eq.s32.totalorder %s224, 0
      %s227 = sadd.s32 %s226, 1
      %s228 = scalar_select %p225, %s226, %s227
      %p231 = pneg %p225
      %p232 = scmp.eq.s32.totalorder %s22, 1
      %p233 = por %p231, %p232
      %p234 = scmp.ne.s32.totalorder %s226, %s229
      %p235 = scmp.eq.s32.totalorder %s22, 0
      %p236 = por %p234, %p235
      %p237 = scmp.ne.s32.totalorder %s226, %s229
      %p238 = scmp.eq.s32.totalorder %s27, 1
      %p239 = por %p237, %p238
      %p240 = scmp.ne.s32.totalorder %s229, %s230
      %p241 = scmp.eq.s32.totalorder %s27, 0
      %p242 = por %p240, %p241
      %p243 = scmp.ne.s32.totalorder %s229, %s230
      %p244 = scmp.eq.s32.totalorder %s28, 1
      %p245 = por %p243, %p244
      %p247 = scmp.ne.s32.totalorder %s230, %s246
      %p248 = scmp.eq.s32.totalorder %s28, 0
      %p249 = por %p247, %p248
      %p250 = scmp.le.s32.totalorder 1, %s22
      %p251 = scmp.lt.s32.totalorder %s22, 3
      %p252 = pnand %p250, %p251
      %p253 = pneg %p252
      // Predicated region
      $region9: #{tpu_custom_call.1} parent=5 // pred_check
        _
      $region10: #{tpu_custom_call.1} parent=5 // pred_check_branch
        %255 = sbr.rel (%p252) target = $region12
      $region11: #{tpu_custom_call.1} parent=5 // pred_region
        %s256 = ssub.s32 %s22, 1
        // Predicated region
        $region13: #{tpu_custom_call.1} parent=11 // pred_check
          %p257 = pneg %p69
        $region14: #{tpu_custom_call.1} parent=11 // pred_check_branch
          %259 = sbr.rel (%p257) target = $region16
        $region15: #{tpu_custom_call.1} parent=11 // pred_region
          %261 = vsyncadd [#allocation6], 0
          %s262 = sshll.u32 %s1, 4
          %s263 = int_to_ptr.hbm [resolvable:$true] %s262
          %s264 = sshll.u32 [#allocation5], 4
          %s265 = int_to_ptr.vmem [resolvable:$true] %s264
          %270 = dma.hbm_to_vmem [thread:$0]  %s263, 1024, %s265, [#allocation6], 64, 64, 4
        $region16: #{tpu_custom_call.1} parent=11 // pred_fallthru
          _
        // Predicated region
        $region17: #{tpu_custom_call.1} parent=11 // pred_check
          %p271 = pneg %p90
        $region18: #{tpu_custom_call.1} parent=11 // pred_check_branch
          %273 = sbr.rel (%p271) target = $region20
        $region19: #{tpu_custom_call.1} parent=11 // pred_region
          _
        $region20: #{tpu_custom_call.1} parent=11 // pred_fallthru
          _
        // Predicated region
        $region21: #{tpu_custom_call.1} parent=11 // pred_check
          %p274 = pneg %p111
        $region22: #{tpu_custom_call.1} parent=11 // pred_check_branch
          %276 = sbr.rel (%p274) target = $region24
        $region23: #{tpu_custom_call.1} parent=11 // pred_region
          %278 = vsyncadd [#allocation6], 0
          %s279 = sshll.u32 %s3, 4
          %s280 = int_to_ptr.hbm [resolvable:$true] %s279
          %s281 = sshll.u32 [#allocation7], 4
          %s282 = int_to_ptr.vmem [resolvable:$true] %s281
          %287 = dma.hbm_to_vmem [thread:$0]  %s280, 1024, %s282, [#allocation6], 64, 64, 4
        $region24: #{tpu_custom_call.1} parent=11 // pred_fallthru
          _
        // Predicated region
        $region25: #{tpu_custom_call.1} parent=11 // pred_check
          %p288 = pneg %p132
        $region26: #{tpu_custom_call.1} parent=11 // pred_check_branch
          %290 = sbr.rel (%p288) target = $region28
        $region27: #{tpu_custom_call.1} parent=11 // pred_region
          _
        $region28: #{tpu_custom_call.1} parent=11 // pred_fallthru
          _
        // Predicated region
        $region29: #{tpu_custom_call.1} parent=11 // pred_check
          %p291 = pneg %p153
        $region30: #{tpu_custom_call.1} parent=11 // pred_check_branch
          %293 = sbr.rel (%p291) target = $region32
        $region31: #{tpu_custom_call.1} parent=11 // pred_region
          %295 = vsyncadd [#allocation9], 0
          %s296 = sshll.u32 %s5, 4
          %s297 = int_to_ptr.hbm [resolvable:$true] %s296
          %s298 = sshll.u32 [#allocation8], 4
          %s299 = int_to_ptr.vmem [resolvable:$true] %s298
          %304 = dma.hbm_to_vmem [thread:$0]  %s297, 1024, %s299, [#allocation9], 64, 64, 4
        $region32: #{tpu_custom_call.1} parent=11 // pred_fallthru
          _
        // Predicated region
        $region33: #{tpu_custom_call.1} parent=11 // pred_check
          %p305 = pneg %p174
        $region34: #{tpu_custom_call.1} parent=11 // pred_check_branch
          %307 = sbr.rel (%p305) target = $region36
        $region35: #{tpu_custom_call.1} parent=11 // pred_region
          _
        $region36: #{tpu_custom_call.1} parent=11 // pred_fallthru
          _
        // Predicated region
        $region37: #{tpu_custom_call.1} parent=11 // pred_check
          %p308 = pneg %p195
        $region38: #{tpu_custom_call.1} parent=11 // pred_check_branch
          %310 = sbr.rel (%p308) target = $region40
        $region39: #{tpu_custom_call.1} parent=11 // pred_region
          _
        $region40: #{tpu_custom_call.1} parent=11 // pred_fallthru
          _
        // Predicated region
        $region41: #{tpu_custom_call.1} parent=11 // pred_check
          %p311 = pneg %p216
        $region42: #{tpu_custom_call.1} parent=11 // pred_check_branch
          %313 = sbr.rel (%p311) target = $region44
        $region43: #{tpu_custom_call.1} parent=11 // pred_region
          _
        $region44: #{tpu_custom_call.1} parent=11 // pred_fallthru
          _
      $region12: #{tpu_custom_call.1} parent=5 // pred_fallthru
        _
      %p314 = scmp.lt.s32.totalorder %s22, 2
      // Predicated region
      $region45: #{tpu_custom_call.1} parent=5 // pred_check
        %p315 = pneg %p314
      $region46: #{tpu_custom_call.1} parent=5 // pred_check_branch
        %317 = sbr.rel (%p315) target = $region48
      $region47: #{tpu_custom_call.1} parent=5 // pred_region
        // Predicated region
        $region49: #{tpu_custom_call.1} parent=47 // pred_check
          %p318 = pneg %p42
        $region50: #{tpu_custom_call.1} parent=47 // pred_check_branch
          %320 = sbr.rel (%p318) target = $region52
        $region51: #{tpu_custom_call.1} parent=47 // pred_region
          %s321 = sand.u32 %s32, 1
          %s322 = scalar_lea.sflag [#allocation4], %s321
          %s323 = sand.u32 %s32, 1
          %s324 = smul.addr %s323, 128
          %s325 = scalar_lea.vmem [#allocation3], %s324
          %s326 = smul.u32 32, %s22
          %328 = vsyncadd %s322, 0
          %s329 = smul.addr %s326, 4
          %s330 = scalar_lea.hbm %s0, %s329
          %s331 = sshll.u32 %s330, 4
          %s332 = int_to_ptr.hbm [resolvable:$true] %s331
          %s333 = sshll.u32 %s325, 4
          %s334 = int_to_ptr.vmem [resolvable:$true] %s333
          %339 = dma.hbm_to_vmem [thread:$0]  %s332, 2048, %s334, %s322, 64, 64, 4
        $region52: #{tpu_custom_call.1} parent=47 // pred_fallthru
          _
      $region48: #{tpu_custom_call.1} parent=5 // pred_fallthru
        _
      %p340 = scmp.le.s32.totalorder 1, %s22
      %p341 = scmp.lt.s32.totalorder %s22, 3
      %p342 = pnand %p340, %p341
      %p343 = pneg %p342
      // Predicated region
      $region53: #{tpu_custom_call.1} parent=5 // pred_check
        _
      $region54: #{tpu_custom_call.1} parent=5 // pred_check_branch
        %345 = sbr.rel (%p342) target = $region56
      $region55: #{tpu_custom_call.1} parent=5 // pred_region
        %s346 = ssub.s32 %s22, 1
        %s347 = sand.u32 %s35, 1
        %s348 = scalar_lea.sflag [#allocation4], %s347
        %s349 = sand.u32 %s35, 1
        %s350 = smul.addr %s349, 128
        %s351 = scalar_lea.vmem [#allocation3], %s350
        // Predicated region
        $region57: #{tpu_custom_call.1} parent=55 // pred_check
          %p352 = pneg %p48
        $region58: #{tpu_custom_call.1} parent=55 // pred_check_branch
          %354 = sbr.rel (%p352) target = $region60
        $region59: #{tpu_custom_call.1} parent=55 // pred_region
          %356 = dma.done %s348, 2048
        $region60: #{tpu_custom_call.1} parent=55 // pred_fallthru
          _
        // Predicated region
        $region61: #{tpu_custom_call.1} parent=55 // pred_check
          %p357 = pneg %p69
        $region62: #{tpu_custom_call.1} parent=55 // pred_check_branch
          %359 = sbr.rel (%p357) target = $region64
        $region63: #{tpu_custom_call.1} parent=55 // pred_region
          %361 = dma.done [#allocation6], 1024
        $region64: #{tpu_custom_call.1} parent=55 // pred_fallthru
          _
        // Predicated region
        $region65: #{tpu_custom_call.1} parent=55 // pred_check
          %p362 = pneg %p111
        $region66: #{tpu_custom_call.1} parent=55 // pred_check_branch
          %364 = sbr.rel (%p362) target = $region68
        $region67: #{tpu_custom_call.1} parent=55 // pred_region
          %366 = dma.done [#allocation6], 1024
        $region68: #{tpu_custom_call.1} parent=55 // pred_fallthru
          _
        // Predicated region
        $region69: #{tpu_custom_call.1} parent=55 // pred_check
          %p367 = pneg %p153
        $region70: #{tpu_custom_call.1} parent=55 // pred_check_branch
          %369 = sbr.rel (%p367) target = $region72
        $region71: #{tpu_custom_call.1} parent=55 // pred_region
          %371 = dma.done [#allocation9], 1024
        $region72: #{tpu_custom_call.1} parent=55 // pred_fallthru
          _
        %s372 = sand.u32 %s35, 1
        %s373 = scalar_lea.sflag [#allocation4], %s372
        %s374 = sand.u32 %s35, 1
        %s375 = smul.addr %s374, 128
        %s376 = scalar_lea.vmem [#allocation3], %s375
        %p377 = pneg %p48
        %p378 = pneg %p45
        %p379 = pneg %p69
        %p380 = pneg %p66
        %p381 = pneg %p90
        %p382 = pneg %p87
        %p383 = pneg %p111
        %p384 = pneg %p108
        %p385 = pneg %p132
        %p386 = pneg %p129
        %p387 = pneg %p153
        %p388 = pneg %p150
        %p389 = pneg %p174
        %p390 = pneg %p171
        %p391 = pneg %p195
        %p392 = pneg %p192
        %p393 = pneg %p216
        %p394 = pneg %p213
        %p395 = pneg %p242
        %p396 = pneg %p239
        %s397 = smul.u32 32, %s27
        %p398 = scmp.lt.s32.totalorder %s397, 63
        %s399 = scalar_select %p398, %s397, 63
        %s400 = smul.addr %s399, 8
        %s401 = scalar_lea.vmem %s9, %s400
        %s402 = smul.u32 32, %s27
        %s403 = smul.u32 32, %s27
        %p404 = scmp.lt.s32.totalorder %s403, 63
        %s405 = scalar_select %p404, %s403, 63
        %s406 = smul.addr %s405, 8
        %s407 = scalar_lea.vmem %s9, %s406
        %s408 = smul.u32 32, %s27
        %v409 = vld [vmem:[%s351] sm:$0xf]
        %v410 = vld [vmem:[%s351 + $0x4] sm:$0xf]
        %v411 = vld [vmem:[%s351 + $0x8] sm:$0xf]
        %v412 = vld [vmem:[%s351 + $0xc] sm:$0xf]
        %v413 = vld [vmem:[%s351 + $0x10] sm:$0xf]
        %v414 = vld [vmem:[%s351 + $0x14] sm:$0xf]
        %v415 = vld [vmem:[%s351 + $0x18] sm:$0xf]
        %v416 = vld [vmem:[%s351 + $0x1c] sm:$0xf]
        %v417 = vld [vmem:[%s351 + $0x20] sm:$0xf]
        %v418 = vld [vmem:[%s351 + $0x24] sm:$0xf]
        %v419 = vld [vmem:[%s351 + $0x28] sm:$0xf]
        %v420 = vld [vmem:[%s351 + $0x2c] sm:$0xf]
        %v421 = vld [vmem:[%s351 + $0x30] sm:$0xf]
        %v422 = vld [vmem:[%s351 + $0x34] sm:$0xf]
        %v423 = vld [vmem:[%s351 + $0x38] sm:$0xf]
        %v424 = vld [vmem:[%s351 + $0x3c] sm:$0xf]
        %v425 = vld [vmem:[%s351 + $0x40] sm:$0xf]
        %v426 = vld [vmem:[%s351 + $0x44] sm:$0xf]
        %v427 = vld [vmem:[%s351 + $0x48] sm:$0xf]
        %v428 = vld [vmem:[%s351 + $0x4c] sm:$0xf]
        %v429 = vld [vmem:[%s351 + $0x50] sm:$0xf]
        %v430 = vld [vmem:[%s351 + $0x54] sm:$0xf]
        %v431 = vld [vmem:[%s351 + $0x58] sm:$0xf]
        %v432 = vld [vmem:[%s351 + $0x5c] sm:$0xf]
        %v433 = vld [vmem:[%s351 + $0x60] sm:$0xf]
        %v434 = vld [vmem:[%s351 + $0x64] sm:$0xf]
        %v435 = vld [vmem:[%s351 + $0x68] sm:$0xf]
        %v436 = vld [vmem:[%s351 + $0x6c] sm:$0xf]
        %v437 = vld [vmem:[%s351 + $0x70] sm:$0xf]
        %v438 = vld [vmem:[%s351 + $0x74] sm:$0xf]
        %v439 = vld [vmem:[%s351 + $0x78] sm:$0xf]
        %v440 = vld [vmem:[%s351 + $0x7c] sm:$0xf]
        %v441 = vld [vmem:[#allocation5] sm:$0xf]
        %v442 = vld [vmem:[#allocation5 + $0x4] sm:$0xf]
        %v443 = vld [vmem:[#allocation5 + $0x8] sm:$0xf]
        %v444 = vld [vmem:[#allocation5 + $0xc] sm:$0xf]
        %v445 = vld [vmem:[#allocation5 + $0x10] sm:$0xf]
        %v446 = vld [vmem:[#allocation5 + $0x14] sm:$0xf]
        %v447 = vld [vmem:[#allocation5 + $0x18] sm:$0xf]
        %v448 = vld [vmem:[#allocation5 + $0x1c] sm:$0xf]
        %v449 = vld [vmem:[#allocation5 + $0x20] sm:$0xf]
        %v450 = vld [vmem:[#allocation5 + $0x24] sm:$0xf]
        %v451 = vld [vmem:[#allocation5 + $0x28] sm:$0xf]
        %v452 = vld [vmem:[#allocation5 + $0x2c] sm:$0xf]
        %v453 = vld [vmem:[#allocation5 + $0x30] sm:$0xf]
        %v454 = vld [vmem:[#allocation5 + $0x34] sm:$0xf]
        %v455 = vld [vmem:[#allocation5 + $0x38] sm:$0xf]
        %v456 = vld [vmem:[#allocation5 + $0x3c] sm:$0xf]
        %v457 = vld [vmem:[%s2] sm:$0x1]
        %v459 = vperm.slane %v457, 0
        %v493 = vunpack.c.l.b16 %v409
        %v494 = vunpack.c.l.b16 %v410
        %v495 = vunpack.c.l.b16 %v411
        %v496 = vunpack.c.l.b16 %v412
        %v497 = vunpack.c.l.b16 %v413
        %v498 = vunpack.c.l.b16 %v414
        %v499 = vunpack.c.l.b16 %v415
        %v500 = vunpack.c.l.b16 %v416
        %v501 = vunpack.c.l.b16 %v417
        %v502 = vunpack.c.l.b16 %v418
        %v503 = vunpack.c.l.b16 %v419
        %v504 = vunpack.c.l.b16 %v420
        %v505 = vunpack.c.l.b16 %v421
        %v506 = vunpack.c.l.b16 %v422
        %v507 = vunpack.c.l.b16 %v423
        %v508 = vunpack.c.l.b16 %v424
        %v509 = vunpack.c.l.b16 %v425
        %v510 = vunpack.c.l.b16 %v426
        %v511 = vunpack.c.l.b16 %v427
        %v512 = vunpack.c.l.b16 %v428
        %v513 = vunpack.c.l.b16 %v429
        %v514 = vunpack.c.l.b16 %v430
        %v515 = vunpack.c.l.b16 %v431
        %v516 = vunpack.c.l.b16 %v432
        %v517 = vunpack.c.l.b16 %v433
        %v518 = vunpack.c.l.b16 %v434
        %v519 = vunpack.c.l.b16 %v435
        %v520 = vunpack.c.l.b16 %v436
        %v521 = vunpack.c.l.b16 %v437
        %v522 = vunpack.c.l.b16 %v438
        %v523 = vunpack.c.l.b16 %v439
        %v524 = vunpack.c.l.b16 %v440
        %v525 = vpack.c.b16 %v494, %v493
        %v526 = vpack.c.b16 %v496, %v495
        %v527 = vpack.c.b16 %v498, %v497
        %v528 = vpack.c.b16 %v500, %v499
        %v529 = vpack.c.b16 %v502, %v501
        %v530 = vpack.c.b16 %v504, %v503
        %v531 = vpack.c.b16 %v506, %v505
        %v532 = vpack.c.b16 %v508, %v507
        %v533 = vpack.c.b16 %v510, %v509
        %v534 = vpack.c.b16 %v512, %v511
        %v535 = vpack.c.b16 %v514, %v513
        %v536 = vpack.c.b16 %v516, %v515
        %v537 = vpack.c.b16 %v518, %v517
        %v538 = vpack.c.b16 %v520, %v519
        %v539 = vpack.c.b16 %v522, %v521
        %v540 = vpack.c.b16 %v524, %v523
        %v573 = vunpack.c.l.b16 %v441
        %v574 = vunpack.c.l.b16 %v442
        %v575 = vunpack.c.l.b16 %v443
        %v576 = vunpack.c.l.b16 %v444
        %v577 = vunpack.c.l.b16 %v445
        %v578 = vunpack.c.l.b16 %v446
        %v579 = vunpack.c.l.b16 %v447
        %v580 = vunpack.c.l.b16 %v448
        %v581 = vunpack.c.l.b16 %v449
        %v582 = vunpack.c.l.b16 %v450
        %v583 = vunpack.c.l.b16 %v451
        %v584 = vunpack.c.l.b16 %v452
        %v585 = vunpack.c.l.b16 %v453
        %v586 = vunpack.c.l.b16 %v454
        %v587 = vunpack.c.l.b16 %v455
        %v588 = vunpack.c.l.b16 %v456
        %v589 = vpack.c.b16 %v574, %v573
        %v590 = vpack.c.b16 %v576, %v575
        %v591 = vpack.c.b16 %v578, %v577
        %v592 = vpack.c.b16 %v580, %v579
        %v593 = vpack.c.b16 %v582, %v581
        %v594 = vpack.c.b16 %v584, %v583
        %v595 = vpack.c.b16 %v586, %v585
        %v596 = vpack.c.b16 %v588, %v587
        %605 = vmatpush.bf16.msra.mxu0 %v596
        %606 = vmatpush.bf16.msra.mxu0 %v595
        %607 = vmatpush.bf16.msra.mxu0 %v594
        %608 = vmatpush.bf16.msra.mxu0 %v593
        %609 = vmatpush.bf16.msra.mxu0 %v592
        %610 = vmatpush.bf16.msra.mxu0 %v591
        %611 = vmatpush.bf16.msra.mxu0 %v590
        %612 = vmatpush.bf16.msra.mxu0 %v589
        %613 = vmatmul.bf16.gmra.mxu0 %v525
        %v614 = vpop.f32.mrf.mxu0
        %v615 = vadd.f32 %v459, %v614
        %v616 = vpop.f32.mrf.mxu0
        %v617 = vadd.f32 %v459, %v616
        %618 = vmatmul.bf16.gmra.mxu0 %v526
        %v619 = vpop.f32.mrf.mxu0
        %v620 = vadd.f32 %v459, %v619
        %v621 = vpop.f32.mrf.mxu0
        %v622 = vadd.f32 %v459, %v621
        %623 = vmatmul.bf16.gmra.mxu0 %v527
        %v624 = vpop.f32.mrf.mxu0
        %v625 = vadd.f32 %v459, %v624
        %v626 = vpop.f32.mrf.mxu0
        %v627 = vadd.f32 %v459, %v626
        %628 = vmatmul.bf16.gmra.mxu0 %v528
        %v629 = vpop.f32.mrf.mxu0
        %v630 = vadd.f32 %v459, %v629
        %v631 = vpop.f32.mrf.mxu0
        %v632 = vadd.f32 %v459, %v631
        %633 = vmatmul.bf16.gmra.mxu0 %v529
        %v634 = vpop.f32.mrf.mxu0
        %v635 = vadd.f32 %v459, %v634
        %v636 = vpop.f32.mrf.mxu0
        %v637 = vadd.f32 %v459, %v636
        %638 = vmatmul.bf16.gmra.mxu0 %v530
        %v639 = vpop.f32.mrf.mxu0
        %v640 = vadd.f32 %v459, %v639
        %v641 = vpop.f32.mrf.mxu0
        %v642 = vadd.f32 %v459, %v641
        %643 = vmatmul.bf16.gmra.mxu0 %v531
        %v644 = vpop.f32.mrf.mxu0
        %v645 = vadd.f32 %v459, %v644
        %v646 = vpop.f32.mrf.mxu0
        %v647 = vadd.f32 %v459, %v646
        %648 = vmatmul.bf16.gmra.mxu0 %v532
        %v649 = vpop.f32.mrf.mxu0
        %v650 = vadd.f32 %v459, %v649
        %v651 = vpop.f32.mrf.mxu0
        %v652 = vadd.f32 %v459, %v651
        %653 = vmatmul.bf16.gmra.mxu0 %v533
        %v654 = vpop.f32.mrf.mxu0
        %v655 = vadd.f32 %v459, %v654
        %v656 = vpop.f32.mrf.mxu0
        %v657 = vadd.f32 %v459, %v656
        %658 = vmatmul.bf16.gmra.mxu0 %v534
        %v659 = vpop.f32.mrf.mxu0
        %v660 = vadd.f32 %v459, %v659
        %v661 = vpop.f32.mrf.mxu0
        %v662 = vadd.f32 %v459, %v661
        %663 = vmatmul.bf16.gmra.mxu0 %v535
        %v664 = vpop.f32.mrf.mxu0
        %v665 = vadd.f32 %v459, %v664
        %v666 = vpop.f32.mrf.mxu0
        %v667 = vadd.f32 %v459, %v666
        %668 = vmatmul.bf16.gmra.mxu0 %v536
        %v669 = vpop.f32.mrf.mxu0
        %v670 = vadd.f32 %v459, %v669
        %v671 = vpop.f32.mrf.mxu0
        %v672 = vadd.f32 %v459, %v671
        %673 = vmatmul.bf16.gmra.mxu0 %v537
        %v674 = vpop.f32.mrf.mxu0
        %v675 = vadd.f32 %v459, %v674
        %v676 = vpop.f32.mrf.mxu0
        %v677 = vadd.f32 %v459, %v676
        %678 = vmatmul.bf16.gmra.mxu0 %v538
        %v679 = vpop.f32.mrf.mxu0
        %v680 = vadd.f32 %v459, %v679
        %v681 = vpop.f32.mrf.mxu0
        %v682 = vadd.f32 %v459, %v681
        %683 = vmatmul.bf16.gmra.mxu0 %v539
        %v684 = vpop.f32.mrf.mxu0
        %v685 = vadd.f32 %v459, %v684
        %v686 = vpop.f32.mrf.mxu0
        %v687 = vadd.f32 %v459, %v686
        %688 = vmatmul.bf16.gmra.mxu0 %v540
        %v689 = vpop.f32.mrf.mxu0
        %v690 = vadd.f32 %v459, %v689
        %v691 = vpop.f32.mrf.mxu0
        %v692 = vadd.f32 %v459, %v691
        %693 = vdwg.mxu0
        %v694 = vmul.f32 %v615, 0.01
        %v695 = vmul.f32 %v617, 0.01
        %v696 = vmul.f32 %v620, 0.01
        %v697 = vmul.f32 %v622, 0.01
        %v698 = vmul.f32 %v625, 0.01
        %v699 = vmul.f32 %v627, 0.01
        %v700 = vmul.f32 %v630, 0.01
        %v701 = vmul.f32 %v632, 0.01
        %v702 = vmul.f32 %v635, 0.01
        %v703 = vmul.f32 %v637, 0.01
        %v704 = vmul.f32 %v640, 0.01
        %v705 = vmul.f32 %v642, 0.01
        %v706 = vmul.f32 %v645, 0.01
        %v707 = vmul.f32 %v647, 0.01
        %v708 = vmul.f32 %v650, 0.01
        %v709 = vmul.f32 %v652, 0.01
        %v710 = vmul.f32 %v655, 0.01
        %v711 = vmul.f32 %v657, 0.01
        %v712 = vmul.f32 %v660, 0.01
        %v713 = vmul.f32 %v662, 0.01
        %v714 = vmul.f32 %v665, 0.01
        %v715 = vmul.f32 %v667, 0.01
        %v716 = vmul.f32 %v670, 0.01
        %v717 = vmul.f32 %v672, 0.01
        %v718 = vmul.f32 %v675, 0.01
        %v719 = vmul.f32 %v677, 0.01
        %v720 = vmul.f32 %v680, 0.01
        %v721 = vmul.f32 %v682, 0.01
        %v722 = vmul.f32 %v685, 0.01
        %v723 = vmul.f32 %v687, 0.01
        %v724 = vmul.f32 %v690, 0.01
        %v725 = vmul.f32 %v692, 0.01
        %v726 = vmax.f32 %v615, %v694
        %v727 = vmax.f32 %v617, %v695
        %v728 = vmax.f32 %v620, %v696
        %v729 = vmax.f32 %v622, %v697
        %v730 = vmax.f32 %v625, %v698
        %v731 = vmax.f32 %v627, %v699
        %v732 = vmax.f32 %v630, %v700
        %v733 = vmax.f32 %v632, %v701
        %v734 = vmax.f32 %v635, %v702
        %v735 = vmax.f32 %v637, %v703
        %v736 = vmax.f32 %v640, %v704
        %v737 = vmax.f32 %v642, %v705
        %v738 = vmax.f32 %v645, %v706
        %v739 = vmax.f32 %v647, %v707
        %v740 = vmax.f32 %v650, %v708
        %v741 = vmax.f32 %v652, %v709
        %v742 = vmax.f32 %v655, %v710
        %v743 = vmax.f32 %v657, %v711
        %v744 = vmax.f32 %v660, %v712
        %v745 = vmax.f32 %v662, %v713
        %v746 = vmax.f32 %v665, %v714
        %v747 = vmax.f32 %v667, %v715
        %v748 = vmax.f32 %v670, %v716
        %v749 = vmax.f32 %v672, %v717
        %v750 = vmax.f32 %v675, %v718
        %v751 = vmax.f32 %v677, %v719
        %v752 = vmax.f32 %v680, %v720
        %v753 = vmax.f32 %v682, %v721
        %v754 = vmax.f32 %v685, %v722
        %v755 = vmax.f32 %v687, %v723
        %v756 = vmax.f32 %v690, %v724
        %v757 = vmax.f32 %v692, %v725
        %v758 = vpack.c.bf16 %v727, %v726
        %v759 = vpack.c.bf16 %v729, %v728
        %v760 = vpack.c.bf16 %v731, %v730
        %v761 = vpack.c.bf16 %v733, %v732
        %v762 = vpack.c.bf16 %v735, %v734
        %v763 = vpack.c.bf16 %v737, %v736
        %v764 = vpack.c.bf16 %v739, %v738
        %v765 = vpack.c.bf16 %v741, %v740
        %v766 = vpack.c.bf16 %v743, %v742
        %v767 = vpack.c.bf16 %v745, %v744
        %v768 = vpack.c.bf16 %v747, %v746
        %v769 = vpack.c.bf16 %v749, %v748
        %v770 = vpack.c.bf16 %v751, %v750
        %v771 = vpack.c.bf16 %v753, %v752
        %v772 = vpack.c.bf16 %v755, %v754
        %v773 = vpack.c.bf16 %v757, %v756
        %v774 = vld [vmem:[#allocation7] sm:$0xf]
        %v775 = vld [vmem:[#allocation7 + $0x4] sm:$0xf]
        %v776 = vld [vmem:[#allocation7 + $0x8] sm:$0xf]
        %v777 = vld [vmem:[#allocation7 + $0xc] sm:$0xf]
        %v778 = vld [vmem:[#allocation7 + $0x10] sm:$0xf]
        %v779 = vld [vmem:[#allocation7 + $0x14] sm:$0xf]
        %v780 = vld [vmem:[#allocation7 + $0x18] sm:$0xf]
        %v781 = vld [vmem:[#allocation7 + $0x1c] sm:$0xf]
        %v782 = vld [vmem:[#allocation7 + $0x20] sm:$0xf]
        %v783 = vld [vmem:[#allocation7 + $0x24] sm:$0xf]
        %v784 = vld [vmem:[#allocation7 + $0x28] sm:$0xf]
        %v785 = vld [vmem:[#allocation7 + $0x2c] sm:$0xf]
        %v786 = vld [vmem:[#allocation7 + $0x30] sm:$0xf]
        %v787 = vld [vmem:[#allocation7 + $0x34] sm:$0xf]
        %v788 = vld [vmem:[#allocation7 + $0x38] sm:$0xf]
        %v789 = vld [vmem:[#allocation7 + $0x3c] sm:$0xf]
        %v790 = vld [vmem:[%s4] sm:$0x1]
        %v792 = vperm.slane %v790, 0
        %v810 = vunpack.c.l.b16 %v774
        %v811 = vunpack.c.l.b16 %v775
        %v812 = vunpack.c.l.b16 %v776
        %v813 = vunpack.c.l.b16 %v777
        %v814 = vunpack.c.l.b16 %v778
        %v815 = vunpack.c.l.b16 %v779
        %v816 = vunpack.c.l.b16 %v780
        %v817 = vunpack.c.l.b16 %v781
        %v818 = vunpack.c.l.b16 %v782
        %v819 = vunpack.c.l.b16 %v783
        %v820 = vunpack.c.l.b16 %v784
        %v821 = vunpack.c.l.b16 %v785
        %v822 = vunpack.c.l.b16 %v786
        %v823 = vunpack.c.l.b16 %v787
        %v824 = vunpack.c.l.b16 %v788
        %v825 = vunpack.c.l.b16 %v789
        %v826 = vpack.c.b16 %v811, %v810
        %v827 = vpack.c.b16 %v813, %v812
        %v828 = vpack.c.b16 %v815, %v814
        %v829 = vpack.c.b16 %v817, %v816
        %v830 = vpack.c.b16 %v819, %v818
        %v831 = vpack.c.b16 %v821, %v820
        %v832 = vpack.c.b16 %v823, %v822
        %v833 = vpack.c.b16 %v825, %v824
        %842 = vmatpush.bf16.msra.mxu0 %v833
        %843 = vmatpush.bf16.msra.mxu0 %v832
        %844 = vmatpush.bf16.msra.mxu0 %v831
        %845 = vmatpush.bf16.msra.mxu0 %v830
        %846 = vmatpush.bf16.msra.mxu0 %v829
        %847 = vmatpush.bf16.msra.mxu0 %v828
        %848 = vmatpush.bf16.msra.mxu0 %v827
        %849 = vmatpush.bf16.msra.mxu0 %v826
        %850 = vmatmul.bf16.gmra.mxu0 %v758
        %v851 = vpop.f32.mrf.mxu0
        %v852 = vadd.f32 %v792, %v851
        %v853 = vpop.f32.mrf.mxu0
        %v854 = vadd.f32 %v792, %v853
        %855 = vmatmul.bf16.gmra.mxu0 %v759
        %v856 = vpop.f32.mrf.mxu0
        %v857 = vadd.f32 %v792, %v856
        %v858 = vpop.f32.mrf.mxu0
        %v859 = vadd.f32 %v792, %v858
        %860 = vmatmul.bf16.gmra.mxu0 %v760
        %v861 = vpop.f32.mrf.mxu0
        %v862 = vadd.f32 %v792, %v861
        %v863 = vpop.f32.mrf.mxu0
        %v864 = vadd.f32 %v792, %v863
        %865 = vmatmul.bf16.gmra.mxu0 %v761
        %v866 = vpop.f32.mrf.mxu0
        %v867 = vadd.f32 %v792, %v866
        %v868 = vpop.f32.mrf.mxu0
        %v869 = vadd.f32 %v792, %v868
        %870 = vmatmul.bf16.gmra.mxu0 %v762
        %v871 = vpop.f32.mrf.mxu0
        %v872 = vadd.f32 %v792, %v871
        %v873 = vpop.f32.mrf.mxu0
        %v874 = vadd.f32 %v792, %v873
        %875 = vmatmul.bf16.gmra.mxu0 %v763
        %v876 = vpop.f32.mrf.mxu0
        %v877 = vadd.f32 %v792, %v876
        %v878 = vpop.f32.mrf.mxu0
        %v879 = vadd.f32 %v792, %v878
        %880 = vmatmul.bf16.gmra.mxu0 %v764
        %v881 = vpop.f32.mrf.mxu0
        %v882 = vadd.f32 %v792, %v881
        %v883 = vpop.f32.mrf.mxu0
        %v884 = vadd.f32 %v792, %v883
        %885 = vmatmul.bf16.gmra.mxu0 %v765
        %v886 = vpop.f32.mrf.mxu0
        %v887 = vadd.f32 %v792, %v886
        %v888 = vpop.f32.mrf.mxu0
        %v889 = vadd.f32 %v792, %v888
        %890 = vmatmul.bf16.gmra.mxu0 %v766
        %v891 = vpop.f32.mrf.mxu0
        %v892 = vadd.f32 %v792, %v891
        %v893 = vpop.f32.mrf.mxu0
        %v894 = vadd.f32 %v792, %v893
        %895 = vmatmul.bf16.gmra.mxu0 %v767
        %v896 = vpop.f32.mrf.mxu0
        %v897 = vadd.f32 %v792, %v896
        %v898 = vpop.f32.mrf.mxu0
        %v899 = vadd.f32 %v792, %v898
        %900 = vmatmul.bf16.gmra.mxu0 %v768
        %v901 = vpop.f32.mrf.mxu0
        %v902 = vadd.f32 %v792, %v901
        %v903 = vpop.f32.mrf.mxu0
        %v904 = vadd.f32 %v792, %v903
        %905 = vmatmul.bf16.gmra.mxu0 %v769
        %v906 = vpop.f32.mrf.mxu0
        %v907 = vadd.f32 %v792, %v906
        %v908 = vpop.f32.mrf.mxu0
        %v909 = vadd.f32 %v792, %v908
        %910 = vmatmul.bf16.gmra.mxu0 %v770
        %v911 = vpop.f32.mrf.mxu0
        %v912 = vadd.f32 %v792, %v911
        %v913 = vpop.f32.mrf.mxu0
        %v914 = vadd.f32 %v792, %v913
        %915 = vmatmul.bf16.gmra.mxu0 %v771
        %v916 = vpop.f32.mrf.mxu0
        %v917 = vadd.f32 %v792, %v916
        %v918 = vpop.f32.mrf.mxu0
        %v919 = vadd.f32 %v792, %v918
        %920 = vmatmul.bf16.gmra.mxu0 %v772
        %v921 = vpop.f32.mrf.mxu0
        %v922 = vadd.f32 %v792, %v921
        %v923 = vpop.f32.mrf.mxu0
        %v924 = vadd.f32 %v792, %v923
        %925 = vmatmul.bf16.gmra.mxu0 %v773
        %v926 = vpop.f32.mrf.mxu0
        %v927 = vadd.f32 %v792, %v926
        %v928 = vpop.f32.mrf.mxu0
        %v929 = vadd.f32 %v792, %v928
        %930 = vdwg.mxu0
        %v931 = vmul.f32 %v852, 0.01
        %v932 = vmul.f32 %v854, 0.01
        %v933 = vmul.f32 %v857, 0.01
        %v934 = vmul.f32 %v859, 0.01
        %v935 = vmul.f32 %v862, 0.01
        %v936 = vmul.f32 %v864, 0.01
        %v937 = vmul.f32 %v867, 0.01
        %v938 = vmul.f32 %v869, 0.01
        %v939 = vmul.f32 %v872, 0.01
        %v940 = vmul.f32 %v874, 0.01
        %v941 = vmul.f32 %v877, 0.01
        %v942 = vmul.f32 %v879, 0.01
        %v943 = vmul.f32 %v882, 0.01
        %v944 = vmul.f32 %v884, 0.01
        %v945 = vmul.f32 %v887, 0.01
        %v946 = vmul.f32 %v889, 0.01
        %v947 = vmul.f32 %v892, 0.01
        %v948 = vmul.f32 %v894, 0.01
        %v949 = vmul.f32 %v897, 0.01
        %v950 = vmul.f32 %v899, 0.01
        %v951 = vmul.f32 %v902, 0.01
        %v952 = vmul.f32 %v904, 0.01
        %v953 = vmul.f32 %v907, 0.01
        %v954 = vmul.f32 %v909, 0.01
        %v955 = vmul.f32 %v912, 0.01
        %v956 = vmul.f32 %v914, 0.01
        %v957 = vmul.f32 %v917, 0.01
        %v958 = vmul.f32 %v919, 0.01
        %v959 = vmul.f32 %v922, 0.01
        %v960 = vmul.f32 %v924, 0.01
        %v961 = vmul.f32 %v927, 0.01
        %v962 = vmul.f32 %v929, 0.01
        %v963 = vmax.f32 %v852, %v931
        %v964 = vmax.f32 %v854, %v932
        %v965 = vmax.f32 %v857, %v933
        %v966 = vmax.f32 %v859, %v934
        %v967 = vmax.f32 %v862, %v935
        %v968 = vmax.f32 %v864, %v936
        %v969 = vmax.f32 %v867, %v937
        %v970 = vmax.f32 %v869, %v938
        %v971 = vmax.f32 %v872, %v939
        %v972 = vmax.f32 %v874, %v940
        %v973 = vmax.f32 %v877, %v941
        %v974 = vmax.f32 %v879, %v942
        %v975 = vmax.f32 %v882, %v943
        %v976 = vmax.f32 %v884, %v944
        %v977 = vmax.f32 %v887, %v945
        %v978 = vmax.f32 %v889, %v946
        %v979 = vmax.f32 %v892, %v947
        %v980 = vmax.f32 %v894, %v948
        %v981 = vmax.f32 %v897, %v949
        %v982 = vmax.f32 %v899, %v950
        %v983 = vmax.f32 %v902, %v951
        %v984 = vmax.f32 %v904, %v952
        %v985 = vmax.f32 %v907, %v953
        %v986 = vmax.f32 %v909, %v954
        %v987 = vmax.f32 %v912, %v955
        %v988 = vmax.f32 %v914, %v956
        %v989 = vmax.f32 %v917, %v957
        %v990 = vmax.f32 %v919, %v958
        %v991 = vmax.f32 %v922, %v959
        %v992 = vmax.f32 %v924, %v960
        %v993 = vmax.f32 %v927, %v961
        %v994 = vmax.f32 %v929, %v962
        %v995 = vpack.c.bf16 %v964, %v963
        %v996 = vpack.c.bf16 %v966, %v965
        %v997 = vpack.c.bf16 %v968, %v967
        %v998 = vpack.c.bf16 %v970, %v969
        %v999 = vpack.c.bf16 %v972, %v971
        %v1000 = vpack.c.bf16 %v974, %v973
        %v1001 = vpack.c.bf16 %v976, %v975
        %v1002 = vpack.c.bf16 %v978, %v977
        %v1003 = vpack.c.bf16 %v980, %v979
        %v1004 = vpack.c.bf16 %v982, %v981
        %v1005 = vpack.c.bf16 %v984, %v983
        %v1006 = vpack.c.bf16 %v986, %v985
        %v1007 = vpack.c.bf16 %v988, %v987
        %v1008 = vpack.c.bf16 %v990, %v989
        %v1009 = vpack.c.bf16 %v992, %v991
        %v1010 = vpack.c.bf16 %v994, %v993
        %v1011 = vld [vmem:[#allocation8] sm:$0xf]
        %v1012 = vld [vmem:[#allocation8 + $0x4] sm:$0xf]
        %v1013 = vld [vmem:[#allocation8 + $0x8] sm:$0xf]
        %v1014 = vld [vmem:[#allocation8 + $0xc] sm:$0xf]
        %v1015 = vld [vmem:[#allocation8 + $0x10] sm:$0xf]
        %v1016 = vld [vmem:[#allocation8 + $0x14] sm:$0xf]
        %v1017 = vld [vmem:[#allocation8 + $0x18] sm:$0xf]
        %v1018 = vld [vmem:[#allocation8 + $0x1c] sm:$0xf]
        %v1019 = vld [vmem:[#allocation8 + $0x20] sm:$0xf]
        %v1020 = vld [vmem:[#allocation8 + $0x24] sm:$0xf]
        %v1021 = vld [vmem:[#allocation8 + $0x28] sm:$0xf]
        %v1022 = vld [vmem:[#allocation8 + $0x2c] sm:$0xf]
        %v1023 = vld [vmem:[#allocation8 + $0x30] sm:$0xf]
        %v1024 = vld [vmem:[#allocation8 + $0x34] sm:$0xf]
        %v1025 = vld [vmem:[#allocation8 + $0x38] sm:$0xf]
        %v1026 = vld [vmem:[#allocation8 + $0x3c] sm:$0xf]
        %v1027 = vld [vmem:[%s6] sm:$0x1]
        %v1029 = vperm.slane %v1027, 0
        %v1047 = vunpack.c.l.b16 %v1011
        %v1048 = vunpack.c.l.b16 %v1012
        %v1049 = vunpack.c.l.b16 %v1013
        %v1050 = vunpack.c.l.b16 %v1014
        %v1051 = vunpack.c.l.b16 %v1015
        %v1052 = vunpack.c.l.b16 %v1016
        %v1053 = vunpack.c.l.b16 %v1017
        %v1054 = vunpack.c.l.b16 %v1018
        %v1055 = vunpack.c.l.b16 %v1019
        %v1056 = vunpack.c.l.b16 %v1020
        %v1057 = vunpack.c.l.b16 %v1021
        %v1058 = vunpack.c.l.b16 %v1022
        %v1059 = vunpack.c.l.b16 %v1023
        %v1060 = vunpack.c.l.b16 %v1024
        %v1061 = vunpack.c.l.b16 %v1025
        %v1062 = vunpack.c.l.b16 %v1026
        %v1063 = vpack.c.b16 %v1048, %v1047
        %v1064 = vpack.c.b16 %v1050, %v1049
        %v1065 = vpack.c.b16 %v1052, %v1051
        %v1066 = vpack.c.b16 %v1054, %v1053
        %v1067 = vpack.c.b16 %v1056, %v1055
        %v1068 = vpack.c.b16 %v1058, %v1057
        %v1069 = vpack.c.b16 %v1060, %v1059
        %v1070 = vpack.c.b16 %v1062, %v1061
        %1079 = vmatpush.bf16.msra.mxu0 %v1070
        %1080 = vmatpush.bf16.msra.mxu0 %v1069
        %1081 = vmatpush.bf16.msra.mxu0 %v1068
        %1082 = vmatpush.bf16.msra.mxu0 %v1067
        %1083 = vmatpush.bf16.msra.mxu0 %v1066
        %1084 = vmatpush.bf16.msra.mxu0 %v1065
        %1085 = vmatpush.bf16.msra.mxu0 %v1064
        %1086 = vmatpush.bf16.msra.mxu0 %v1063
        %1087 = vmatmul.bf16.gmra.mxu0 %v995
        %v1088 = vpop.f32.mrf.mxu0
        %v1089 = vadd.f32 %v1029, %v1088
        %v1090 = vpop.f32.mrf.mxu0
        %v1091 = vadd.f32 %v1029, %v1090
        %1092 = vmatmul.bf16.gmra.mxu0 %v996
        %v1093 = vpop.f32.mrf.mxu0
        %v1094 = vadd.f32 %v1029, %v1093
        %v1095 = vpop.f32.mrf.mxu0
        %v1096 = vadd.f32 %v1029, %v1095
        %1097 = vmatmul.bf16.gmra.mxu0 %v997
        %v1098 = vpop.f32.mrf.mxu0
        %v1099 = vadd.f32 %v1029, %v1098
        %v1100 = vpop.f32.mrf.mxu0
        %v1101 = vadd.f32 %v1029, %v1100
        %1102 = vmatmul.bf16.gmra.mxu0 %v998
        %v1103 = vpop.f32.mrf.mxu0
        %v1104 = vadd.f32 %v1029, %v1103
        %v1105 = vpop.f32.mrf.mxu0
        %v1106 = vadd.f32 %v1029, %v1105
        %1107 = vmatmul.bf16.gmra.mxu0 %v999
        %v1108 = vpop.f32.mrf.mxu0
        %v1109 = vadd.f32 %v1029, %v1108
        %v1110 = vpop.f32.mrf.mxu0
        %v1111 = vadd.f32 %v1029, %v1110
        %1112 = vmatmul.bf16.gmra.mxu0 %v1000
        %v1113 = vpop.f32.mrf.mxu0
        %v1114 = vadd.f32 %v1029, %v1113
        %v1115 = vpop.f32.mrf.mxu0
        %v1116 = vadd.f32 %v1029, %v1115
        %1117 = vmatmul.bf16.gmra.mxu0 %v1001
        %v1118 = vpop.f32.mrf.mxu0
        %v1119 = vadd.f32 %v1029, %v1118
        %v1120 = vpop.f32.mrf.mxu0
        %v1121 = vadd.f32 %v1029, %v1120
        %1122 = vmatmul.bf16.gmra.mxu0 %v1002
        %v1123 = vpop.f32.mrf.mxu0
        %v1124 = vadd.f32 %v1029, %v1123
        %v1125 = vpop.f32.mrf.mxu0
        %v1126 = vadd.f32 %v1029, %v1125
        %1127 = vmatmul.bf16.gmra.mxu0 %v1003
        %v1128 = vpop.f32.mrf.mxu0
        %v1129 = vadd.f32 %v1029, %v1128
        %v1130 = vpop.f32.mrf.mxu0
        %v1131 = vadd.f32 %v1029, %v1130
        %1132 = vmatmul.bf16.gmra.mxu0 %v1004
        %v1133 = vpop.f32.mrf.mxu0
        %v1134 = vadd.f32 %v1029, %v1133
        %v1135 = vpop.f32.mrf.mxu0
        %v1136 = vadd.f32 %v1029, %v1135
        %1137 = vmatmul.bf16.gmra.mxu0 %v1005
        %v1138 = vpop.f32.mrf.mxu0
        %v1139 = vadd.f32 %v1029, %v1138
        %v1140 = vpop.f32.mrf.mxu0
        %v1141 = vadd.f32 %v1029, %v1140
        %1142 = vmatmul.bf16.gmra.mxu0 %v1006
        %v1143 = vpop.f32.mrf.mxu0
        %v1144 = vadd.f32 %v1029, %v1143
        %v1145 = vpop.f32.mrf.mxu0
        %v1146 = vadd.f32 %v1029, %v1145
        %1147 = vmatmul.bf16.gmra.mxu0 %v1007
        %v1148 = vpop.f32.mrf.mxu0
        %v1149 = vadd.f32 %v1029, %v1148
        %v1150 = vpop.f32.mrf.mxu0
        %v1151 = vadd.f32 %v1029, %v1150
        %1152 = vmatmul.bf16.gmra.mxu0 %v1008
        %v1153 = vpop.f32.mrf.mxu0
        %v1154 = vadd.f32 %v1029, %v1153
        %v1155 = vpop.f32.mrf.mxu0
        %v1156 = vadd.f32 %v1029, %v1155
        %1157 = vmatmul.bf16.gmra.mxu0 %v1009
        %v1158 = vpop.f32.mrf.mxu0
        %v1159 = vadd.f32 %v1029, %v1158
        %v1160 = vpop.f32.mrf.mxu0
        %v1161 = vadd.f32 %v1029, %v1160
        %1162 = vmatmul.bf16.gmra.mxu0 %v1010
        %v1163 = vpop.f32.mrf.mxu0
        %v1164 = vadd.f32 %v1029, %v1163
        %v1165 = vpop.f32.mrf.mxu0
        %v1166 = vadd.f32 %v1029, %v1165
        %1167 = vdwg.mxu0
        %v1168 = vmul.f32 %v1089, 0.01
        %v1169 = vmul.f32 %v1091, 0.01
        %v1170 = vmul.f32 %v1094, 0.01
        %v1171 = vmul.f32 %v1096, 0.01
        %v1172 = vmul.f32 %v1099, 0.01
        %v1173 = vmul.f32 %v1101, 0.01
        %v1174 = vmul.f32 %v1104, 0.01
        %v1175 = vmul.f32 %v1106, 0.01
        %v1176 = vmul.f32 %v1109, 0.01
        %v1177 = vmul.f32 %v1111, 0.01
        %v1178 = vmul.f32 %v1114, 0.01
        %v1179 = vmul.f32 %v1116, 0.01
        %v1180 = vmul.f32 %v1119, 0.01
        %v1181 = vmul.f32 %v1121, 0.01
        %v1182 = vmul.f32 %v1124, 0.01
        %v1183 = vmul.f32 %v1126, 0.01
        %v1184 = vmul.f32 %v1129, 0.01
        %v1185 = vmul.f32 %v1131, 0.01
        %v1186 = vmul.f32 %v1134, 0.01
        %v1187 = vmul.f32 %v1136, 0.01
        %v1188 = vmul.f32 %v1139, 0.01
        %v1189 = vmul.f32 %v1141, 0.01
        %v1190 = vmul.f32 %v1144, 0.01
        %v1191 = vmul.f32 %v1146, 0.01
        %v1192 = vmul.f32 %v1149, 0.01
        %v1193 = vmul.f32 %v1151, 0.01
        %v1194 = vmul.f32 %v1154, 0.01
        %v1195 = vmul.f32 %v1156, 0.01
        %v1196 = vmul.f32 %v1159, 0.01
        %v1197 = vmul.f32 %v1161, 0.01
        %v1198 = vmul.f32 %v1164, 0.01
        %v1199 = vmul.f32 %v1166, 0.01
        %v1200 = vmax.f32 %v1089, %v1168
        %v1201 = vmax.f32 %v1091, %v1169
        %v1202 = vmax.f32 %v1094, %v1170
        %v1203 = vmax.f32 %v1096, %v1171
        %v1204 = vmax.f32 %v1099, %v1172
        %v1205 = vmax.f32 %v1101, %v1173
        %v1206 = vmax.f32 %v1104, %v1174
        %v1207 = vmax.f32 %v1106, %v1175
        %v1208 = vmax.f32 %v1109, %v1176
        %v1209 = vmax.f32 %v1111, %v1177
        %v1210 = vmax.f32 %v1114, %v1178
        %v1211 = vmax.f32 %v1116, %v1179
        %v1212 = vmax.f32 %v1119, %v1180
        %v1213 = vmax.f32 %v1121, %v1181
        %v1214 = vmax.f32 %v1124, %v1182
        %v1215 = vmax.f32 %v1126, %v1183
        %v1216 = vmax.f32 %v1129, %v1184
        %v1217 = vmax.f32 %v1131, %v1185
        %v1218 = vmax.f32 %v1134, %v1186
        %v1219 = vmax.f32 %v1136, %v1187
        %v1220 = vmax.f32 %v1139, %v1188
        %v1221 = vmax.f32 %v1141, %v1189
        %v1222 = vmax.f32 %v1144, %v1190
        %v1223 = vmax.f32 %v1146, %v1191
        %v1224 = vmax.f32 %v1149, %v1192
        %v1225 = vmax.f32 %v1151, %v1193
        %v1226 = vmax.f32 %v1154, %v1194
        %v1227 = vmax.f32 %v1156, %v1195
        %v1228 = vmax.f32 %v1159, %v1196
        %v1229 = vmax.f32 %v1161, %v1197
        %v1230 = vmax.f32 %v1164, %v1198
        %v1231 = vmax.f32 %v1166, %v1199
        %v1232 = vld [vmem:[%s7] sm:$0x1]
        %v1234 = vperm.slane %v1232, 0
        %v1236 = vmul.f32 %v1200, %v1234
        %v1237 = vmul.f32 %v1201, %v1234
        %v1238 = vmul.f32 %v1202, %v1234
        %v1239 = vmul.f32 %v1203, %v1234
        %v1240 = vmul.f32 %v1204, %v1234
        %v1241 = vmul.f32 %v1205, %v1234
        %v1242 = vmul.f32 %v1206, %v1234
        %v1243 = vmul.f32 %v1207, %v1234
        %v1244 = vmul.f32 %v1208, %v1234
        %v1245 = vmul.f32 %v1209, %v1234
        %v1246 = vmul.f32 %v1210, %v1234
        %v1247 = vmul.f32 %v1211, %v1234
        %v1248 = vmul.f32 %v1212, %v1234
        %v1249 = vmul.f32 %v1213, %v1234
        %v1250 = vmul.f32 %v1214, %v1234
        %v1251 = vmul.f32 %v1215, %v1234
        %v1252 = vmul.f32 %v1216, %v1234
        %v1253 = vmul.f32 %v1217, %v1234
        %v1254 = vmul.f32 %v1218, %v1234
        %v1255 = vmul.f32 %v1219, %v1234
        %v1256 = vmul.f32 %v1220, %v1234
        %v1257 = vmul.f32 %v1221, %v1234
        %v1258 = vmul.f32 %v1222, %v1234
        %v1259 = vmul.f32 %v1223, %v1234
        %v1260 = vmul.f32 %v1224, %v1234
        %v1261 = vmul.f32 %v1225, %v1234
        %v1262 = vmul.f32 %v1226, %v1234
        %v1263 = vmul.f32 %v1227, %v1234
        %v1264 = vmul.f32 %v1228, %v1234
        %v1265 = vmul.f32 %v1229, %v1234
        %v1266 = vmul.f32 %v1230, %v1234
        %v1267 = vmul.f32 %v1231, %v1234
        %1268 = vadd.xlane.f32.xlu0 %v1236
        %v1269 = vpop.xlane.xlu0 %1268
        %1270 = vadd.xlane.f32.xlu0 %v1237
        %v1271 = vpop.xlane.xlu0 %1270
        %1272 = vadd.xlane.f32.xlu0 %v1238
        %v1273 = vpop.xlane.xlu0 %1272
        %1274 = vadd.xlane.f32.xlu0 %v1239
        %v1275 = vpop.xlane.xlu0 %1274
        %1276 = vadd.xlane.f32.xlu0 %v1240
        %v1277 = vpop.xlane.xlu0 %1276
        %1278 = vadd.xlane.f32.xlu0 %v1241
        %v1279 = vpop.xlane.xlu0 %1278
        %1280 = vadd.xlane.f32.xlu0 %v1242
        %v1281 = vpop.xlane.xlu0 %1280
        %1282 = vadd.xlane.f32.xlu0 %v1243
        %v1283 = vpop.xlane.xlu0 %1282
        %1284 = vadd.xlane.f32.xlu0 %v1244
        %v1285 = vpop.xlane.xlu0 %1284
        %1286 = vadd.xlane.f32.xlu0 %v1245
        %v1287 = vpop.xlane.xlu0 %1286
        %1288 = vadd.xlane.f32.xlu0 %v1246
        %v1289 = vpop.xlane.xlu0 %1288
        %1290 = vadd.xlane.f32.xlu0 %v1247
        %v1291 = vpop.xlane.xlu0 %1290
        %1292 = vadd.xlane.f32.xlu0 %v1248
        %v1293 = vpop.xlane.xlu0 %1292
        %1294 = vadd.xlane.f32.xlu0 %v1249
        %v1295 = vpop.xlane.xlu0 %1294
        %1296 = vadd.xlane.f32.xlu0 %v1250
        %v1297 = vpop.xlane.xlu0 %1296
        %1298 = vadd.xlane.f32.xlu0 %v1251
        %v1299 = vpop.xlane.xlu0 %1298
        %1300 = vadd.xlane.f32.xlu0 %v1252
        %v1301 = vpop.xlane.xlu0 %1300
        %1302 = vadd.xlane.f32.xlu0 %v1253
        %v1303 = vpop.xlane.xlu0 %1302
        %1304 = vadd.xlane.f32.xlu0 %v1254
        %v1305 = vpop.xlane.xlu0 %1304
        %1306 = vadd.xlane.f32.xlu0 %v1255
        %v1307 = vpop.xlane.xlu0 %1306
        %1308 = vadd.xlane.f32.xlu0 %v1256
        %v1309 = vpop.xlane.xlu0 %1308
        %1310 = vadd.xlane.f32.xlu0 %v1257
        %v1311 = vpop.xlane.xlu0 %1310
        %1312 = vadd.xlane.f32.xlu0 %v1258
        %v1313 = vpop.xlane.xlu0 %1312
        %1314 = vadd.xlane.f32.xlu0 %v1259
        %v1315 = vpop.xlane.xlu0 %1314
        %1316 = vadd.xlane.f32.xlu0 %v1260
        %v1317 = vpop.xlane.xlu0 %1316
        %1318 = vadd.xlane.f32.xlu0 %v1261
        %v1319 = vpop.xlane.xlu0 %1318
        %1320 = vadd.xlane.f32.xlu0 %v1262
        %v1321 = vpop.xlane.xlu0 %1320
        %1322 = vadd.xlane.f32.xlu0 %v1263
        %v1323 = vpop.xlane.xlu0 %1322
        %1324 = vadd.xlane.f32.xlu0 %v1264
        %v1325 = vpop.xlane.xlu0 %1324
        %1326 = vadd.xlane.f32.xlu0 %v1265
        %v1327 = vpop.xlane.xlu0 %1326
        %1328 = vadd.xlane.f32.xlu0 %v1266
        %v1329 = vpop.xlane.xlu0 %1328
        %1330 = vadd.xlane.f32.xlu0 %v1267
        %v1331 = vpop.xlane.xlu0 %1330
        %v1332 = vld [vmem:[#allocation2] sm:$0x1]
        %v1334 = vperm.slane %v1332, 0
        %v1336 = vadd.f32 %v1269, %v1334
        %v1337 = vadd.f32 %v1271, %v1334
        %v1338 = vadd.f32 %v1273, %v1334
        %v1339 = vadd.f32 %v1275, %v1334
        %v1340 = vadd.f32 %v1277, %v1334
        %v1341 = vadd.f32 %v1279, %v1334
        %v1342 = vadd.f32 %v1281, %v1334
        %v1343 = vadd.f32 %v1283, %v1334
        %v1344 = vadd.f32 %v1285, %v1334
        %v1345 = vadd.f32 %v1287, %v1334
        %v1346 = vadd.f32 %v1289, %v1334
        %v1347 = vadd.f32 %v1291, %v1334
        %v1348 = vadd.f32 %v1293, %v1334
        %v1349 = vadd.f32 %v1295, %v1334
        %v1350 = vadd.f32 %v1297, %v1334
        %v1351 = vadd.f32 %v1299, %v1334
        %v1352 = vadd.f32 %v1301, %v1334
        %v1353 = vadd.f32 %v1303, %v1334
        %v1354 = vadd.f32 %v1305, %v1334
        %v1355 = vadd.f32 %v1307, %v1334
        %v1356 = vadd.f32 %v1309, %v1334
        %v1357 = vadd.f32 %v1311, %v1334
        %v1358 = vadd.f32 %v1313, %v1334
        %v1359 = vadd.f32 %v1315, %v1334
        %v1360 = vadd.f32 %v1317, %v1334
        %v1361 = vadd.f32 %v1319, %v1334
        %v1362 = vadd.f32 %v1321, %v1334
        %v1363 = vadd.f32 %v1323, %v1334
        %v1364 = vadd.f32 %v1325, %v1334
        %v1365 = vadd.f32 %v1327, %v1334
        %v1366 = vadd.f32 %v1329, %v1334
        %v1367 = vadd.f32 %v1331, %v1334
        %v1368 = vtanh.pop %v1336
        %v1369 = vtanh.pop %v1337
        %v1370 = vtanh.pop %v1338
        %v1371 = vtanh.pop %v1339
        %v1372 = vtanh.pop %v1340
        %v1373 = vtanh.pop %v1341
        %v1374 = vtanh.pop %v1342
        %v1375 = vtanh.pop %v1343
        %v1376 = vtanh.pop %v1344
        %v1377 = vtanh.pop %v1345
        %v1378 = vtanh.pop %v1346
        %v1379 = vtanh.pop %v1347
        %v1380 = vtanh.pop %v1348
        %v1381 = vtanh.pop %v1349
        %v1382 = vtanh.pop %v1350
        %v1383 = vtanh.pop %v1351
        %v1384 = vtanh.pop %v1352
        %v1385 = vtanh.pop %v1353
        %v1386 = vtanh.pop %v1354
        %v1387 = vtanh.pop %v1355
        %v1388 = vtanh.pop %v1356
        %v1389 = vtanh.pop %v1357
        %v1390 = vtanh.pop %v1358
        %v1391 = vtanh.pop %v1359
        %v1392 = vtanh.pop %v1360
        %v1393 = vtanh.pop %v1361
        %v1394 = vtanh.pop %v1362
        %v1395 = vtanh.pop %v1363
        %v1396 = vtanh.pop %v1364
        %v1397 = vtanh.pop %v1365
        %v1398 = vtanh.pop %v1366
        %v1399 = vtanh.pop %v1367
        %vm1400 = vcmask 7168
        %1401 = vst.msk [vmem:[%s407] sm:$0xff] %vm1400, %v1368
        %1402 = vst.msk [vmem:[%s407 + $0x8] sm:$0xff] %vm1400, %v1369
        %1403 = vst.msk [vmem:[%s407 + $0x10] sm:$0xff] %vm1400, %v1370
        %1404 = vst.msk [vmem:[%s407 + $0x18] sm:$0xff] %vm1400, %v1371
        %1405 = vst.msk [vmem:[%s407 + $0x20] sm:$0xff] %vm1400, %v1372
        %1406 = vst.msk [vmem:[%s407 + $0x28] sm:$0xff] %vm1400, %v1373
        %1407 = vst.msk [vmem:[%s407 + $0x30] sm:$0xff] %vm1400, %v1374
        %1408 = vst.msk [vmem:[%s407 + $0x38] sm:$0xff] %vm1400, %v1375
        %1409 = vst.msk [vmem:[%s407 + $0x40] sm:$0xff] %vm1400, %v1376
        %1410 = vst.msk [vmem:[%s407 + $0x48] sm:$0xff] %vm1400, %v1377
        %1411 = vst.msk [vmem:[%s407 + $0x50] sm:$0xff] %vm1400, %v1378
        %1412 = vst.msk [vmem:[%s407 + $0x58] sm:$0xff] %vm1400, %v1379
        %1413 = vst.msk [vmem:[%s407 + $0x60] sm:$0xff] %vm1400, %v1380
        %1414 = vst.msk [vmem:[%s407 + $0x68] sm:$0xff] %vm1400, %v1381
        %1415 = vst.msk [vmem:[%s407 + $0x70] sm:$0xff] %vm1400, %v1382
        %1416 = vst.msk [vmem:[%s407 + $0x78] sm:$0xff] %vm1400, %v1383
        %1417 = vst.msk [vmem:[%s407 + $0x80] sm:$0xff] %vm1400, %v1384
        %1418 = vst.msk [vmem:[%s407 + $0x88] sm:$0xff] %vm1400, %v1385
        %1419 = vst.msk [vmem:[%s407 + $0x90] sm:$0xff] %vm1400, %v1386
        %1420 = vst.msk [vmem:[%s407 + $0x98] sm:$0xff] %vm1400, %v1387
        %1421 = vst.msk [vmem:[%s407 + $0xa0] sm:$0xff] %vm1400, %v1388
        %1422 = vst.msk [vmem:[%s407 + $0xa8] sm:$0xff] %vm1400, %v1389
        %1423 = vst.msk [vmem:[%s407 + $0xb0] sm:$0xff] %vm1400, %v1390
        %1424 = vst.msk [vmem:[%s407 + $0xb8] sm:$0xff] %vm1400, %v1391
        %1425 = vst.msk [vmem:[%s407 + $0xc0] sm:$0xff] %vm1400, %v1392
        %1426 = vst.msk [vmem:[%s407 + $0xc8] sm:$0xff] %vm1400, %v1393
        %1427 = vst.msk [vmem:[%s407 + $0xd0] sm:$0xff] %vm1400, %v1394
        %1428 = vst.msk [vmem:[%s407 + $0xd8] sm:$0xff] %vm1400, %v1395
        %1429 = vst.msk [vmem:[%s407 + $0xe0] sm:$0xff] %vm1400, %v1396
        %1430 = vst.msk [vmem:[%s407 + $0xe8] sm:$0xff] %vm1400, %v1397
        %1431 = vst.msk [vmem:[%s407 + $0xf0] sm:$0xff] %vm1400, %v1398
        %1432 = vst.msk [vmem:[%s407 + $0xf8] sm:$0xff] %vm1400, %v1399
        %s1433 = smul.u32 32, %s27
        %p1434 = scmp.lt.s32.totalorder %s1433, 63
        %s1435 = scalar_select %p1434, %s1433, 63
        %s1436 = smul.addr %s1435, 8
        %s1437 = scalar_lea.vmem %s9, %s1436
        // Predicated region
        $region73: #{tpu_custom_call.1} parent=55 // pred_check
          %p1438 = pneg %p239
        $region74: #{tpu_custom_call.1} parent=55 // pred_check_branch
          %1440 = sbr.rel (%p1438) target = $region76
        $region75: #{tpu_custom_call.1} parent=55 // pred_region
          %s1441 = smul.u32 32, %s27
        $region76: #{tpu_custom_call.1} parent=55 // pred_fallthru
          _
      $region56: #{tpu_custom_call.1} parent=5 // pred_fallthru
        _
      %p1442 = scmp.le.s32.totalorder 2, %s22
      // Predicated region
      $region77: #{tpu_custom_call.1} parent=5 // pred_check
        %p1443 = pneg %p1442
      $region78: #{tpu_custom_call.1} parent=5 // pred_check_branch
        %1445 = sbr.rel (%p1443) target = $region80
      $region79: #{tpu_custom_call.1} parent=5 // pred_region
        %s1446 = ssub.s32 %s22, 2
        // Predicated region
        $region81: #{tpu_custom_call.1} parent=79 // pred_check
          %p1447 = pneg %p245
        $region82: #{tpu_custom_call.1} parent=79 // pred_check_branch
          %1449 = sbr.rel (%p1447) target = $region84
        $region83: #{tpu_custom_call.1} parent=79 // pred_region
          %s1450 = smul.u32 32, %s28
          %p1451 = scmp.lt.s32.totalorder %s1450, 63
          %s1452 = scalar_select %p1451, %s1450, 63
          %s1453 = smul.addr %s1452, 8
          %s1454 = scalar_lea.vmem %s9, %s1453
        $region84: #{tpu_custom_call.1} parent=79 // pred_fallthru
          _
      $region80: #{tpu_custom_call.1} parent=5 // pred_fallthru
        _
    $region6: #{tpu_custom_call.1} parent=1 // loop_footer
      %s26 = sadd.s32 1, %s22
    $region7: #{tpu_custom_call.1} parent=1 // loop_footer_branch
      %21 = sbr.rel target = $region3
    $region8: #{tpu_custom_call.1} parent=1 // loop_exit
      _
    %1455 = vsyncpa [#allocation4], 1
    %s1456 = scalar_lea.sflag [#allocation4], 1
    %1457 = vsyncpa %s1456, 1
    %1458 = vsyncpa [#allocation6], 1
    %1459 = vsyncpa [#allocation9], 1

</llo_original>
